<compile_context>
chip_gen: v6e
topology: v6e:2x2x1
jax: 0.10.0
libtpu: 0.0.40
codegen_flags: <defaults>
</compile_context>

<pallas_src>
import functools

import jax
import jax.numpy as jnp
from jax.experimental import pallas as pl
from jax.experimental.pallas import tpu as pltpu


def _round_up(x, m):
    return ((x + m - 1) // m) * m


# ----------------------------------------------------------------------------
# Emission MLP kernel: one M-tile per grid step, weights resident in VMEM.
# ----------------------------------------------------------------------------
def emission_kernel(x_ref, w1_ref, b1_ref, w2_ref, b2_ref, em_ref):
    # Linear 1 (MXU, f32 accumulate) + bias + ReLU (VPU, f32)
    h = jnp.dot(x_ref[...], w1_ref[...], preferred_element_type=jnp.float32)
    h = jnp.maximum(h + b1_ref[...], 0.0)
    # Linear 2 (MXU); operand dtype follows w2 (f32 or bf16 fast path)
    em = jnp.dot(h.astype(w2_ref.dtype), w2_ref[...],
                 preferred_element_type=jnp.float32)
    em_ref[...] = em + b2_ref[...]


# ----------------------------------------------------------------------------
# Tiny grid-less kernel for the x-independent softmaxes (computed once).
# ----------------------------------------------------------------------------
def softmax_kernel(trans_ref, start_ref, tp_ref, sp_ref):
    t = trans_ref[...]
    t = t - jnp.max(t, axis=-1, keepdims=True)
    te = jnp.exp(t)
    tp_ref[...] = te * pl.reciprocal(jnp.sum(te, axis=-1, keepdims=True),
                                     approx=True)

    s = start_ref[...]
    s = s - jnp.max(s, axis=-1, keepdims=True)
    se = jnp.exp(s)
    sp_ref[...] = se * pl.reciprocal(jnp.sum(se, axis=-1, keepdims=True),
                                     approx=True)


def _emission_vmem_bytes(tm, d, h, c_pad):
    bpe = 4  # budget conservatively in f32 bytes
    per_iter = 2 * tm * (d + c_pad) * bpe                 # double-buffered x + em tiles
    resident = 2 * (d * h + h + h * c_pad + c_pad) * bpe  # weights/biases (2 bufs)
    return min(per_iter + resident + (8 << 20), 64 << 20)


@functools.partial(jax.jit, static_argnames=("matmul_dtype",))
def hmm_forward(x, params, matmul_dtype=jnp.float32):
    """x: (batch, seq, input_dim) f32.

    Returns (emissions (B,S,C), transition_probs (C,C), start_probs (C,)).
    """
    w1, b1, w2, b2, trans, start = params
    B, S, D = x.shape
    H = w1.shape[1]
    C = w2.shape[1]

    M = B * S
    TM = min(512, _round_up(M, 16))       # 16-row multiple: safe for f32 & bf16 tiles
    M_pad = _round_up(M, TM)
    C_pad = _round_up(C, 128)             # lane-dense emission output

    # --- wrapper-side layout prep (padding / dtype casts) ---
    x2d = x.reshape(M, D)
    if M_pad != M:
        x2d = jnp.pad(x2d, ((0, M_pad - M), (0, 0)))
    x2d = x2d.astype(matmul_dtype)
    w1c = w1.astype(matmul_dtype)
    w2p = jnp.pad(w2, ((0, 0), (0, C_pad - C))).astype(matmul_dtype)
    b1_2d = b1.reshape(1, H).astype(jnp.float32)
    b2_2d = jnp.pad(b2.reshape(1, C), ((0, 0), (0, C_pad - C))).astype(jnp.float32)

    grid = (M_pad // TM,)
    in_bpe = jnp.dtype(matmul_dtype).itemsize
    cost = pl.CostEstimate(
        flops=2 * M_pad * (D * H + H * C_pad),
        transcendentals=0,
        bytes_accessed=(M_pad * D + D * H + H * C_pad) * in_bpe
        + (H + C_pad) * 4 + M_pad * C_pad * 4,
    )

    em2d = pl.pallas_call(
        emission_kernel,
        out_shape=jax.ShapeDtypeStruct((M_pad, C_pad), jnp.float32),
        grid=grid,
        in_specs=[
            pl.BlockSpec((TM, D), lambda i: (i, 0)),       # x tile (pipelined)
            pl.BlockSpec((D, H), lambda i: (0, 0)),        # w1 (resident)
            pl.BlockSpec((1, H), lambda i: (0, 0)),        # b1 (resident)
            pl.BlockSpec((H, C_pad), lambda i: (0, 0)),    # w2 padded (resident)
            pl.BlockSpec((1, C_pad), lambda i: (0, 0)),    # b2 padded (resident)
        ],
        out_specs=pl.BlockSpec((TM, C_pad), lambda i: (i, 0)),
        compiler_params=pltpu.CompilerParams(
            dimension_semantics=("parallel",),             # megacore shard on v7x
            vmem_limit_bytes=_emission_vmem_bytes(TM, D, H, C_pad),
        ),
        cost_estimate=cost,
    )(x2d, w1c, b1_2d, w2p, b2_2d)

    emissions = em2d[:M, :C].reshape(B, S, C)

    # x-independent softmaxes: tiny grid-less call, computed exactly once.
    vmem_spec = pl.BlockSpec(memory_space=pltpu.MemorySpace.VMEM)
    tp, sp2d = pl.pallas_call(
        softmax_kernel,
        out_shape=(
            jax.ShapeDtypeStruct((C, C), jnp.float32),
            jax.ShapeDtypeStruct((1, C), jnp.float32),
        ),
        in_specs=[vmem_spec, vmem_spec],
        out_specs=(vmem_spec, vmem_spec),
    )(trans, start.reshape(1, C))

    return emissions, tp, sp2d.reshape(C)


def init_params(key, input_dim, num_classes, hidden=128):
    k1, k2, k3, k4, k5, k6 = jax.random.split(key, 6)
    # Deterministic synthetic init (shapes match the PyTorch module).
    w1 = jax.random.normal(k1, (input_dim, hidden), jnp.float32) * 0.1
    b1 = jax.random.normal(k2, (hidden,), jnp.float32) * 0.1
    w2 = jax.random.normal(k3, (hidden, num_classes), jnp.float32) * 0.1
    b2 = jax.random.normal(k4, (num_classes,), jnp.float32) * 0.1
    transition_matrix = jax.random.normal(k5, (num_classes, num_classes), jnp.float32)
    start_probs = jax.random.normal(k6, (num_classes,), jnp.float32)
    return (w1, b1, w2, b2, transition_matrix, start_probs)


if __name__ == "__main__":
    batch, seq, input_dim, num_classes = 2, 8, 32, 8

    key = jax.random.PRNGKey(0)
    kx, kp = jax.random.split(key)
    x = jax.random.normal(kx, (batch, seq, input_dim), jnp.float32)
    params = init_params(kp, input_dim, num_classes)

    emissions, transition_probs, start_probs = jax.block_until_ready(
        hmm_forward(x, params)
    )

    # Reference of the same forward in plain JAX.
    w1, b1, w2, b2, trans, start = params
    ref_em = jnp.maximum(x @ w1 + b1, 0.0) @ w2 + b2
    ref_tp = jax.nn.softmax(trans, axis=-1)
    ref_sp = jax.nn.softmax(start, axis=0)

    assert emissions.shape == (batch, seq, num_classes)
    assert transition_probs.shape == (num_classes, num_classes)
    assert start_probs.shape == (num_classes,)
    assert jnp.allclose(emissions, ref_em, atol=1e-4, rtol=1e-4)
    # softmax uses approx (EUP) reciprocal -> slightly looser tolerance
    assert jnp.allclose(transition_probs, ref_tp, atol=2e-3, rtol=2e-3)
    assert jnp.allclose(start_probs, ref_sp, atol=2e-3, rtol=2e-3)

    # bf16 MXU-operand fast path (v6e/v7x peak), f32 accumulation.
    em_bf, tp_bf, sp_bf = jax.block_until_ready(
        hmm_forward(x, params, matmul_dtype=jnp.bfloat16)
    )
    assert em_bf.shape == (batch, seq, num_classes)
    assert jnp.allclose(em_bf, ref_em, atol=1e-1, rtol=1e-1)

    print("KERNEL_OK")
</pallas_src>

<mosaic_0001>
module attributes {stable_mosaic.version = 11 : i64} {
  func.func @emission_kernel(%arg0: i32, %arg1: memref<16x32xf32, #tpu.memory_space<vmem>>, %arg2: memref<32x128xf32, #tpu.memory_space<vmem>>, %arg3: memref<1x128xf32, #tpu.memory_space<vmem>>, %arg4: memref<128x128xf32, #tpu.memory_space<vmem>>, %arg5: memref<1x128xf32, #tpu.memory_space<vmem>>, %arg6: memref<16x128xf32, #tpu.memory_space<vmem>>) attributes {dimension_semantics = [#tpu.dimension_semantics<parallel>], iteration_bounds = array<i64: 1>, scalar_prefetch = 0 : i64, scratch_operands = 0 : i64, tpu.core_type = #tpu.core_type<tc>, window_params = [{transform_indices = @transform_0, window_bounds = array<i64: 16, 32>}, {pipeline_mode = #tpu.pipeline_mode<synchronous>, transform_indices = @transform_1, window_bounds = array<i64: 32, 128>}, {pipeline_mode = #tpu.pipeline_mode<synchronous>, transform_indices = @transform_2, window_bounds = array<i64: 1, 128>}, {pipeline_mode = #tpu.pipeline_mode<synchronous>, transform_indices = @transform_3, window_bounds = array<i64: 128, 128>}, {pipeline_mode = #tpu.pipeline_mode<synchronous>, transform_indices = @transform_4, window_bounds = array<i64: 1, 128>}, {transform_indices = @transform_5, window_bounds = array<i64: 16, 128>}]} {
    %c0 = arith.constant 0 : index
    %c0_0 = arith.constant 0 : index
    %0 = vector.load %arg1[%c0, %c0_0] : memref<16x32xf32, #tpu.memory_space<vmem>>, vector<16x32xf32>
    %c0_1 = arith.constant 0 : index
    %c0_2 = arith.constant 0 : index
    %1 = vector.load %arg2[%c0_1, %c0_2] : memref<32x128xf32, #tpu.memory_space<vmem>>, vector<32x128xf32>
    %cst = arith.constant dense<0.000000e+00> : vector<16x128xf32>
    %2 = tpu.matmul %0, %1, %cst {dimension_numbers = #tpu.dot_dimension_numbers<[1], [0], [0], [1], [0, 0, 1, 1], [], []>} : vector<16x32xf32>, vector<32x128xf32>, vector<16x128xf32> -> vector<16x128xf32>
    %c0_3 = arith.constant 0 : index
    %c0_4 = arith.constant 0 : index
    %3 = vector.load %arg3[%c0_3, %c0_4] : memref<1x128xf32, #tpu.memory_space<vmem>>, vector<1x128xf32>
    %4 = vector.broadcast %3 : vector<1x128xf32> to vector<16x128xf32>
    %5 = arith.addf %2, %4 : vector<16x128xf32>
    %cst_5 = arith.constant 0.000000e+00 : f32
    %6 = vector.broadcast %cst_5 : f32 to vector<16x128xf32>
    %7 = arith.maximumf %5, %6 : vector<16x128xf32>
    %c0_6 = arith.constant 0 : index
    %c0_7 = arith.constant 0 : index
    %8 = vector.load %arg4[%c0_6, %c0_7] : memref<128x128xf32, #tpu.memory_space<vmem>>, vector<128x128xf32>
    %cst_8 = arith.constant dense<0.000000e+00> : vector<16x128xf32>
    %9 = tpu.matmul %7, %8, %cst_8 {dimension_numbers = #tpu.dot_dimension_numbers<[1], [0], [0], [1], [0, 0, 1, 1], [], []>} : vector<16x128xf32>, vector<128x128xf32>, vector<16x128xf32> -> vector<16x128xf32>
    %c0_9 = arith.constant 0 : index
    %c0_10 = arith.constant 0 : index
    %10 = vector.load %arg5[%c0_9, %c0_10] : memref<1x128xf32, #tpu.memory_space<vmem>>, vector<1x128xf32>
    %11 = vector.broadcast %10 : vector<1x128xf32> to vector<16x128xf32>
    %12 = arith.addf %9, %11 : vector<16x128xf32>
    %c0_11 = arith.constant 0 : index
    %c0_12 = arith.constant 0 : index
    %13 = vector.load %arg6[%c0_11, %c0_12] : memref<16x128xf32, #tpu.memory_space<vmem>>, vector<16x128xf32>
    tpu.vector_store %arg6[%c0_11, %c0_12], %12 {strides = array<i32>} : memref<16x128xf32, #tpu.memory_space<vmem>>, vector<16x128xf32>,
    return
  }
  func.func @transform_0(%arg0: i32) -> (i32, i32) {
    %c0_i32 = arith.constant 0 : i32
    %c0_i32_0 = arith.constant 0 : i32
    return %arg0, %c0_i32 : i32, i32
  }
  func.func @transform_1(%arg0: i32) -> (i32, i32) {
    %c0_i32 = arith.constant 0 : i32
    %c0_i32_0 = arith.constant 0 : i32
    %c0_i32_1 = arith.constant 0 : i32
    return %c0_i32, %c0_i32_0 : i32, i32
  }
  func.func @transform_2(%arg0: i32) -> (i32, i32) {
    %c0_i32 = arith.constant 0 : i32
    %c0_i32_0 = arith.constant 0 : i32
    %c0_i32_1 = arith.constant 0 : i32
    return %c0_i32, %c0_i32_0 : i32, i32
  }
  func.func @transform_3(%arg0: i32) -> (i32, i32) {
    %c0_i32 = arith.constant 0 : i32
    %c0_i32_0 = arith.constant 0 : i32
    %c0_i32_1 = arith.constant 0 : i32
    return %c0_i32, %c0_i32_0 : i32, i32
  }
  func.func @transform_4(%arg0: i32) -> (i32, i32) {
    %c0_i32 = arith.constant 0 : i32
    %c0_i32_0 = arith.constant 0 : i32
    %c0_i32_1 = arith.constant 0 : i32
    return %c0_i32, %c0_i32_0 : i32, i32
  }
  func.func @transform_5(%arg0: i32) -> (i32, i32) {
    %c0_i32 = arith.constant 0 : i32
    %c0_i32_0 = arith.constant 0 : i32
    return %arg0, %c0_i32 : i32, i32
  }
}

module attributes {stable_mosaic.version = 11 : i64} {
  func.func @softmax_kernel(%arg0: memref<8x8xf32, #tpu.memory_space<vmem>>, %arg1: memref<1x8xf32, #tpu.memory_space<vmem>>, %arg2: memref<8x8xf32, #tpu.memory_space<vmem>>, %arg3: memref<1x8xf32, #tpu.memory_space<vmem>>) attributes {dimension_semantics = [], scalar_prefetch = 0 : i64, scratch_operands = 0 : i64, tpu.core_type = #tpu.core_type<tc>} {
    %c0 = arith.constant 0 : index
    %c0_0 = arith.constant 0 : index
    %0 = vector.load %arg0[%c0, %c0_0] : memref<8x8xf32, #tpu.memory_space<vmem>>, vector<8x8xf32>
    %cst = arith.constant dense<0xFF800000> : vector<8xf32>
    %1 = vector.multi_reduction <maximumf>, %0, %cst [1] : vector<8x8xf32> to vector<8xf32>
    %2 = vector.shape_cast %1 : vector<8xf32> to vector<8x1xf32>
    %3 = vector.broadcast %2 : vector<8x1xf32> to vector<8x8xf32>
    %4 = arith.subf %0, %3 : vector<8x8xf32>
    %5 = math.exp %4 : vector<8x8xf32>
    %cst_1 = arith.constant dense<0.000000e+00> : vector<8xf32>
    %6 = vector.multi_reduction <add>, %5, %cst_1 [1] : vector<8x8xf32> to vector<8xf32>
    %7 = vector.shape_cast %6 : vector<8xf32> to vector<8x1xf32>
    %8 = tpu.reciprocal %7 {approx = true} : vector<8x1xf32> -> vector<8x1xf32>
    %9 = vector.broadcast %8 : vector<8x1xf32> to vector<8x8xf32>
    %10 = arith.mulf %5, %9 : vector<8x8xf32>
    %c0_2 = arith.constant 0 : index
    %c0_3 = arith.constant 0 : index
    %11 = vector.load %arg2[%c0_2, %c0_3] : memref<8x8xf32, #tpu.memory_space<vmem>>, vector<8x8xf32>
    tpu.vector_store %arg2[%c0_2, %c0_3], %10 {strides = array<i32>} : memref<8x8xf32, #tpu.memory_space<vmem>>, vector<8x8xf32>,
    %c0_4 = arith.constant 0 : index
    %c0_5 = arith.constant 0 : index
    %12 = vector.load %arg1[%c0_4, %c0_5] : memref<1x8xf32, #tpu.memory_space<vmem>>, vector<1x8xf32>
    %cst_6 = arith.constant dense<0xFF800000> : vector<1xf32>
    %13 = vector.multi_reduction <maximumf>, %12, %cst_6 [1] : vector<1x8xf32> to vector<1xf32>
    %14 = vector.shape_cast %13 : vector<1xf32> to vector<1x1xf32>
    %15 = vector.broadcast %14 : vector<1x1xf32> to vector<1x8xf32>
    %16 = arith.subf %12, %15 : vector<1x8xf32>
    %17 = math.exp %16 : vector<1x8xf32>
    %cst_7 = arith.constant dense<0.000000e+00> : vector<1xf32>
    %18 = vector.multi_reduction <add>, %17, %cst_7 [1] : vector<1x8xf32> to vector<1xf32>
    %19 = vector.shape_cast %18 : vector<1xf32> to vector<1x1xf32>
    %20 = tpu.reciprocal %19 {approx = true} : vector<1x1xf32> -> vector<1x1xf32>
    %21 = vector.broadcast %20 : vector<1x1xf32> to vector<1x8xf32>
    %22 = arith.mulf %17, %21 : vector<1x8xf32>
    %c0_8 = arith.constant 0 : index
    %c0_9 = arith.constant 0 : index
    %23 = vector.load %arg3[%c0_8, %c0_9] : memref<1x8xf32, #tpu.memory_space<vmem>>, vector<1x8xf32>
    tpu.vector_store %arg3[%c0_8, %c0_9], %22 {strides = array<i32>} : memref<1x8xf32, #tpu.memory_space<vmem>>, vector<1x8xf32>,
    return
  }
}

</mosaic_0001>

<llo_original>
// kernel: hmm_forward.3
$region0: #{hmm_forward.3}
  #allocation0 [shape = 'u32[]', space=smem, size = 0x4, offset = 0x4, fixed_abs, tag = 'smem constant byte address 0x4 - core index']
  #allocation1 [shape = 'u32[144,128]{1,0:T(1,128)}', space=vmem, size = 0x12000, scoped, tag = 'internal scratch']
  %s0 = inlined_call_operand.vmem [shape: f32[8,8], index: 0, kind: input, shape index: {}]
  %s1 = inlined_call_operand.vmem [shape: f32[1,8], index: 1, kind: input, shape index: {}]
  %s2 = inlined_call_operand.hbm [shape: f32[8,8], index: 2, kind: output, shape index: {0}]
  %s3 = inlined_call_operand.hbm [shape: f32[1,8], index: 3, kind: output, shape index: {1}]
  %4 = xla_tuple %s2, %s3
  %s5 = sld [smem:[#allocation0]]
  $region26: #{hmm_forward.3} parent=0
    _
  %s7 = ssub.s32 1, %s5
  %s8 = scalar_select 0, %s7, %s5
  $region1: #{hmm_forward.3} parent=0
    #allocation2 [shape = 'u8[4096]{0}', space=vmem, size = 0x1000, scoped, tag = 'output window, operand 0, single buffered']
    #allocation3 [shape = 's32[1]{0}', space=sflag, size = 0x4, scoped, tag = 'scoped memory for hmm_forward.3']
    #allocation4 [shape = 'u8[512]{0}', space=vmem, size = 0x400, scoped, tag = 'output window, operand 1, single buffered']
    #allocation5 [shape = 's32[1]{0}', space=sflag, size = 0x4, scoped, tag = 'scoped memory for hmm_forward.3']
    %9 = vsyncpa [#allocation3], 0
    %10 = vsyncpa [#allocation5], 0
    // Predicated region
    $region2: #{hmm_forward.3} parent=1 // pred_check
      _
    $region3: #{hmm_forward.3} parent=1 // pred_check_branch
      %12 = sbr.rel (0) target = $region5
    $region4: #{hmm_forward.3} parent=1 // pred_region
      _
    $region5: #{hmm_forward.3} parent=1 // pred_fallthru
      _
    // Predicated region
    $region6: #{hmm_forward.3} parent=1 // pred_check
      _
    $region7: #{hmm_forward.3} parent=1 // pred_check_branch
      %14 = sbr.rel (0) target = $region9
    $region8: #{hmm_forward.3} parent=1 // pred_region
      _
    $region9: #{hmm_forward.3} parent=1 // pred_fallthru
      _
    %v15 = vld [vmem:[%s0] sm:$0xff]
    %vm16 = vcmask 64512
    %v17 = vsel %vm16, %v15, -inf
    %18 = vmax.xlane.f32.xlu0 %v17
    %v19 = vpop.xlane.xlu0 %18
    %v20 = vsub.f32 %v15, %v19
    %v21 = vmul.f32 %v20, 1.442695
    %v22 = vpow.pop %v21
    %v23 = vsel %vm16, %v22, 0.0
    %24 = vadd.xlane.f32.xlu0 %v23
    %v25 = vpop.xlane.xlu0 %24
    %v26 = vrcp.pop %v25
    %v27 = vmul.f32 %v22, %v26
    %28 = vst.msk [vmem:[#allocation2] sm:$0xff] %vm16, %v27
    %v29 = vld [vmem:[%s1] sm:$0x1]
    %vm30 = vcmask 57344
    %v31 = vsel %vm30, %v29, -inf
    %32 = vmax.xlane.f32.xlu0 %v31
    %v33 = vpop.xlane.xlu0 %32
    %v34 = vsub.f32 %v29, %v33
    %v35 = vmul.f32 %v34, 1.442695
    %v36 = vpow.pop %v35
    %v37 = vsel %vm30, %v36, 0.0
    %38 = vadd.xlane.f32.xlu0 %v37
    %v39 = vpop.xlane.xlu0 %38
    %v40 = vrcp.pop %v39
    %v41 = vmul.f32 %v36, %v40
    %42 = vst.msk [vmem:[#allocation4] sm:$0x1] %vm30, %v41
    // Predicated region
    $region10: #{hmm_forward.3} parent=1 // pred_check
      _
    $region11: #{hmm_forward.3} parent=1 // pred_check_branch
      %44 = sbr.rel (0) target = $region13
    $region12: #{hmm_forward.3} parent=1 // pred_region
      %s46 = ssub.s32 128, 128
      %47 = vsyncadd [#allocation3], %s46
      %s49 = sshll.u32 [#allocation2], 4
      %s50 = int_to_ptr.vmem [resolvable:$true] %s49
      %52 = dma.vmem_to_hbm [thread:$0]  %s50, 128, %s2, [#allocation3]
    $region13: #{hmm_forward.3} parent=1 // pred_fallthru
      _
    // Predicated region
    $region14: #{hmm_forward.3} parent=1 // pred_check
      _
    $region15: #{hmm_forward.3} parent=1 // pred_check_branch
      %54 = sbr.rel (0) target = $region17
    $region16: #{hmm_forward.3} parent=1 // pred_region
      %s56 = ssub.s32 16, 16
      %57 = vsyncadd [#allocation5], %s56
      %s59 = sshll.u32 [#allocation4], 4
      %s60 = int_to_ptr.vmem [resolvable:$true] %s59
      %62 = dma.vmem_to_hbm [thread:$0]  %s60, 16, %s3, [#allocation5]
    $region17: #{hmm_forward.3} parent=1 // pred_fallthru
      _
    // Predicated region
    $region18: #{hmm_forward.3} parent=1 // pred_check
      _
    $region19: #{hmm_forward.3} parent=1 // pred_check_branch
      %64 = sbr.rel (0) target = $region21
    $region20: #{hmm_forward.3} parent=1 // pred_region
      %65 = dma.done [#allocation3], 128
    $region21: #{hmm_forward.3} parent=1 // pred_fallthru
      _
    // Predicated region
    $region22: #{hmm_forward.3} parent=1 // pred_check
      _
    $region23: #{hmm_forward.3} parent=1 // pred_check_branch
      %67 = sbr.rel (0) target = $region25
    $region24: #{hmm_forward.3} parent=1 // pred_region
      %68 = dma.done [#allocation5], 16
    $region25: #{hmm_forward.3} parent=1 // pred_fallthru
      _
    %69 = vsyncpa [#allocation3], 1
    %70 = vsyncpa [#allocation5], 1

// kernel: hmm_forward.2
$region0: #{hmm_forward.2}
  #allocation0 [shape = 'u32[]', space=smem, size = 0x4, offset = 0x4, fixed_abs, tag = 'smem constant byte address 0x4 - core index']
  #allocation1 [shape = 'u32[144,128]{1,0:T(1,128)}', space=vmem, size = 0x12000, scoped, tag = 'internal scratch']
  %s0 = inlined_call_operand.vmem [shape: f32[16,32], index: 0, kind: input, shape index: {}]
  %s1 = inlined_call_operand.vmem [shape: f32[32,128], index: 1, kind: input, shape index: {}]
  %s2 = inlined_call_operand.vmem [shape: f32[1,128], index: 2, kind: input, shape index: {}]
  %s3 = inlined_call_operand.vmem [shape: f32[128,128], index: 3, kind: input, shape index: {}]
  %s4 = inlined_call_operand.vmem [shape: f32[1,128], index: 4, kind: input, shape index: {}]
  %s5 = inlined_call_operand.vmem [shape: f32[16,128], index: 5, kind: output, shape index: {}]
  %s6 = sld [smem:[#allocation0]]
  $region30: #{hmm_forward.2} parent=0
    _
  %s8 = ssub.s32 1, %s6
  %s9 = scalar_select 0, %s8, %s6
  // Predicated region
  $region2: #{hmm_forward.2} parent=0 // pred_check
    _
  $region3: #{hmm_forward.2} parent=0 // pred_check_branch
    %11 = sbr.rel (0) target = $region5
  $region4: #{hmm_forward.2} parent=0 // pred_region
    _
  $region5: #{hmm_forward.2} parent=0 // pred_fallthru
    _
  // Predicated region
  $region6: #{hmm_forward.2} parent=0 // pred_check
    _
  $region7: #{hmm_forward.2} parent=0 // pred_check_branch
    %13 = sbr.rel (0) target = $region9
  $region8: #{hmm_forward.2} parent=0 // pred_region
    _
  $region9: #{hmm_forward.2} parent=0 // pred_fallthru
    _
  // Predicated region
  $region10: #{hmm_forward.2} parent=0 // pred_check
    _
  $region11: #{hmm_forward.2} parent=0 // pred_check_branch
    %15 = sbr.rel (0) target = $region13
  $region12: #{hmm_forward.2} parent=0 // pred_region
    _
  $region13: #{hmm_forward.2} parent=0 // pred_fallthru
    _
  // Predicated region
  $region14: #{hmm_forward.2} parent=0 // pred_check
    _
  $region15: #{hmm_forward.2} parent=0 // pred_check_branch
    %17 = sbr.rel (0) target = $region17
  $region16: #{hmm_forward.2} parent=0 // pred_region
    _
  $region17: #{hmm_forward.2} parent=0 // pred_fallthru
    _
  // Predicated region
  $region18: #{hmm_forward.2} parent=0 // pred_check
    _
  $region19: #{hmm_forward.2} parent=0 // pred_check_branch
    %19 = sbr.rel (0) target = $region21
  $region20: #{hmm_forward.2} parent=0 // pred_region
    _
  $region21: #{hmm_forward.2} parent=0 // pred_fallthru
    _
  %v20 = vld [vmem:[%s0] sm:$0xff]
  %v21 = vld [vmem:[%s0 + $0x8] sm:$0xff]
  %v22 = vld [vmem:[%s1] sm:$0xff]
  %v23 = vld [vmem:[%s1 + $0x8] sm:$0xff]
  %v24 = vld [vmem:[%s1 + $0x10] sm:$0xff]
  %v25 = vld [vmem:[%s1 + $0x18] sm:$0xff]
  %v26 = vld [vmem:[%s2] sm:$0x1]
  %v28 = vlaneseq
  %v29 = vshrl.u32 %v28, 7
  %v30 = vsub.s32 0, %v29
  %v31 = vrot.slane %v26, %v30
  %vm33 = vcmask 261120
  %v35 = vsel %vm33, %v20, 0
  %v38 = vsel %vm33, %v21, 0
  %40 = vmatprep.subr.mxu0 0.0
  %41 = vmatpush1.msra.mxu0 0.0
  %42 = vmatprep.subr.mxu0 0.0
  %43 = vmatpush1.msra.mxu0 0.0
  %44 = vmatprep.subr.mxu0 0.0
  %45 = vmatpush1.msra.mxu0 0.0
  %46 = vmatprep.subr.mxu0 0.0
  %47 = vmatpush1.msra.mxu0 0.0
  %48 = vmatprep.subr.mxu0 0.0
  %49 = vmatpush1.msra.mxu0 0.0
  %50 = vmatprep.subr.mxu0 0.0
  %51 = vmatpush1.msra.mxu0 0.0
  %52 = vmatprep.subr.mxu0 0.0
  %53 = vmatpush1.msra.mxu0 0.0
  %54 = vmatprep.subr.mxu0 0.0
  %55 = vmatpush1.msra.mxu0 0.0
  %56 = vmatprep.subr.mxu0 0.0
  %57 = vmatpush1.msra.mxu0 0.0
  %58 = vmatprep.subr.mxu0 0.0
  %59 = vmatpush1.msra.mxu0 0.0
  %60 = vmatprep.subr.mxu0 0.0
  %61 = vmatpush1.msra.mxu0 0.0
  %62 = vmatprep.subr.mxu0 0.0
  %63 = vmatpush1.msra.mxu0 0.0
  %64 = vmatprep.subr.mxu0 0.0
  %65 = vmatpush1.msra.mxu0 %v25
  %66 = vmatprep.subr.mxu0 0.0
  %67 = vmatpush1.msra.mxu0 %v24
  %68 = vmatprep.subr.mxu0 0.0
  %69 = vmatpush1.msra.mxu0 %v23
  %70 = vmatprep.subr.mxu0 0.0
  %71 = vmatpush1.msra.mxu0 %v22
  %72 = vmatprep.subr.mxu0 0.0
  %73 = vmatpush2.msra.mxu0 0.0
  %74 = vmatprep.subr.mxu0 0.0
  %75 = vmatpush2.msra.mxu0 0.0
  %76 = vmatprep.subr.mxu0 0.0
  %77 = vmatpush2.msra.mxu0 0.0
  %78 = vmatprep.subr.mxu0 0.0
  %79 = vmatpush2.msra.mxu0 0.0
  %80 = vmatprep.subr.mxu0 0.0
  %81 = vmatpush2.msra.mxu0 0.0
  %82 = vmatprep.subr.mxu0 0.0
  %83 = vmatpush2.msra.mxu0 0.0
  %84 = vmatprep.subr.mxu0 0.0
  %85 = vmatpush2.msra.mxu0 0.0
  %86 = vmatprep.subr.mxu0 0.0
  %87 = vmatpush2.msra.mxu0 0.0
  %88 = vmatprep.subr.mxu0 0.0
  %89 = vmatpush2.msra.mxu0 0.0
  %90 = vmatprep.subr.mxu0 0.0
  %91 = vmatpush2.msra.mxu0 0.0
  %92 = vmatprep.subr.mxu0 0.0
  %93 = vmatpush2.msra.mxu0 0.0
  %94 = vmatprep.subr.mxu0 0.0
  %95 = vmatpush2.msra.mxu0 0.0
  %96 = vmatprep.subr.mxu0 0.0
  %97 = vmatpush2.msra.mxu0 0.0
  %98 = vmatprep.subr.mxu0 0.0
  %99 = vmatpush2.msra.mxu0 0.0
  %100 = vmatprep.subr.mxu0 0.0
  %101 = vmatpush2.msra.mxu0 0.0
  %102 = vmatprep.subr.mxu0 0.0
  %103 = vmatpush2.msra.mxu0 0.0
  %104 = vmatprep.mubr.f32.mxu0 0.0
  %105 = vmatmul.mubr.f32.gmra.mxu0 %v35
  %v106 = vpop.f32.mrf.mxu0
  %v107 = vadd.f32 %v31, %v106
  %v108 = vpop.f32.mrf.mxu0
  %109 = vmatprep.mubr.f32.mxu0 0.0
  %110 = vmatmul.mubr.f32.gmra.mxu0 %v38
  %v111 = vpop.f32.mrf.mxu0
  %v112 = vadd.f32 %v31, %v111
  %v113 = vpop.f32.mrf.mxu0
  %114 = vdwg.mxu0
  %v115 = vmax.f32 %v107, 0.0
  %v116 = vmax.f32 %v112, 0.0
  %v117 = vld [vmem:[%s3] sm:$0xff]
  %v118 = vld [vmem:[%s3 + $0x8] sm:$0xff]
  %v119 = vld [vmem:[%s3 + $0x10] sm:$0xff]
  %v120 = vld [vmem:[%s3 + $0x18] sm:$0xff]
  %v121 = vld [vmem:[%s3 + $0x20] sm:$0xff]
  %v122 = vld [vmem:[%s3 + $0x28] sm:$0xff]
  %v123 = vld [vmem:[%s3 + $0x30] sm:$0xff]
  %v124 = vld [vmem:[%s3 + $0x38] sm:$0xff]
  %v125 = vld [vmem:[%s3 + $0x40] sm:$0xff]
  %v126 = vld [vmem:[%s3 + $0x48] sm:$0xff]
  %v127 = vld [vmem:[%s3 + $0x50] sm:$0xff]
  %v128 = vld [vmem:[%s3 + $0x58] sm:$0xff]
  %v129 = vld [vmem:[%s3 + $0x60] sm:$0xff]
  %v130 = vld [vmem:[%s3 + $0x68] sm:$0xff]
  %v131 = vld [vmem:[%s3 + $0x70] sm:$0xff]
  %v132 = vld [vmem:[%s3 + $0x78] sm:$0xff]
  %v133 = vld [vmem:[%s4] sm:$0x1]
  %v135 = vlaneseq
  %v136 = vshrl.u32 %v135, 7
  %v137 = vsub.s32 0, %v136
  %v138 = vrot.slane %v133, %v137
  %140 = vmatprep.subr.mxu0 0.0
  %141 = vmatpush1.msra.mxu0 %v132
  %142 = vmatprep.subr.mxu0 0.0
  %143 = vmatpush1.msra.mxu0 %v131
  %144 = vmatprep.subr.mxu0 0.0
  %145 = vmatpush1.msra.mxu0 %v130
  %146 = vmatprep.subr.mxu0 0.0
  %147 = vmatpush1.msra.mxu0 %v129
  %148 = vmatprep.subr.mxu0 0.0
  %149 = vmatpush1.msra.mxu0 %v128
  %150 = vmatprep.subr.mxu0 0.0
  %151 = vmatpush1.msra.mxu0 %v127
  %152 = vmatprep.subr.mxu0 0.0
  %153 = vmatpush1.msra.mxu0 %v126
  %154 = vmatprep.subr.mxu0 0.0
  %155 = vmatpush1.msra.mxu0 %v125
  %156 = vmatprep.subr.mxu0 0.0
  %157 = vmatpush1.msra.mxu0 %v124
  %158 = vmatprep.subr.mxu0 0.0
  %159 = vmatpush1.msra.mxu0 %v123
  %160 = vmatprep.subr.mxu0 0.0
  %161 = vmatpush1.msra.mxu0 %v122
  %162 = vmatprep.subr.mxu0 0.0
  %163 = vmatpush1.msra.mxu0 %v121
  %164 = vmatprep.subr.mxu0 0.0
  %165 = vmatpush1.msra.mxu0 %v120
  %166 = vmatprep.subr.mxu0 0.0
  %167 = vmatpush1.msra.mxu0 %v119
  %168 = vmatprep.subr.mxu0 0.0
  %169 = vmatpush1.msra.mxu0 %v118
  %170 = vmatprep.subr.mxu0 0.0
  %171 = vmatpush1.msra.mxu0 %v117
  %172 = vmatprep.subr.mxu0 0.0
  %173 = vmatpush2.msra.mxu0 0.0
  %174 = vmatprep.subr.mxu0 0.0
  %175 = vmatpush2.msra.mxu0 0.0
  %176 = vmatprep.subr.mxu0 0.0
  %177 = vmatpush2.msra.mxu0 0.0
  %178 = vmatprep.subr.mxu0 0.0
  %179 = vmatpush2.msra.mxu0 0.0
  %180 = vmatprep.subr.mxu0 0.0
  %181 = vmatpush2.msra.mxu0 0.0
  %182 = vmatprep.subr.mxu0 0.0
  %183 = vmatpush2.msra.mxu0 0.0
  %184 = vmatprep.subr.mxu0 0.0
  %185 = vmatpush2.msra.mxu0 0.0
  %186 = vmatprep.subr.mxu0 0.0
  %187 = vmatpush2.msra.mxu0 0.0
  %188 = vmatprep.subr.mxu0 0.0
  %189 = vmatpush2.msra.mxu0 0.0
  %190 = vmatprep.subr.mxu0 0.0
  %191 = vmatpush2.msra.mxu0 0.0
  %192 = vmatprep.subr.mxu0 0.0
  %193 = vmatpush2.msra.mxu0 0.0
  %194 = vmatprep.subr.mxu0 0.0
  %195 = vmatpush2.msra.mxu0 0.0
  %196 = vmatprep.subr.mxu0 0.0
  %197 = vmatpush2.msra.mxu0 0.0
  %198 = vmatprep.subr.mxu0 0.0
  %199 = vmatpush2.msra.mxu0 0.0
  %200 = vmatprep.subr.mxu0 0.0
  %201 = vmatpush2.msra.mxu0 0.0
  %202 = vmatprep.subr.mxu0 0.0
  %203 = vmatpush2.msra.mxu0 0.0
  %204 = vmatprep.mubr.f32.mxu0 0.0
  %205 = vmatmul.mubr.f32.gmra.mxu0 %v115
  %v206 = vpop.f32.mrf.mxu0
  %v207 = vadd.f32 %v138, %v206
  %v208 = vpop.f32.mrf.mxu0
  %209 = vmatprep.mubr.f32.mxu0 0.0
  %210 = vmatmul.mubr.f32.gmra.mxu0 %v116
  %v211 = vpop.f32.mrf.mxu0
  %v212 = vadd.f32 %v138, %v211
  %v213 = vpop.f32.mrf.mxu0
  %214 = vdwg.mxu0
  %215 = vst [vmem:[%s5] sm:$0xff] %v207
  %216 = vst [vmem:[%s5 + $0x8] sm:$0xff] %v212
  // Predicated region
  $region22: #{hmm_forward.2} parent=0 // pred_check
    _
  $region23: #{hmm_forward.2} parent=0 // pred_check_branch
    %218 = sbr.rel (0) target = $region25
  $region24: #{hmm_forward.2} parent=0 // pred_region
    _
  $region25: #{hmm_forward.2} parent=0 // pred_fallthru
    _
  // Predicated region
  $region26: #{hmm_forward.2} parent=0 // pred_check
    _
  $region27: #{hmm_forward.2} parent=0 // pred_check_branch
    %220 = sbr.rel (0) target = $region29
  $region28: #{hmm_forward.2} parent=0 // pred_region
    _
  $region29: #{hmm_forward.2} parent=0 // pred_fallthru
    _

</llo_original>
